<compile_context>
chip_gen: v6e
topology: v6e:2x2x1
jax: 0.10.0
libtpu: 0.0.40
codegen_flags: <defaults>
</compile_context>

<pallas_src>
import functools

import jax
import jax.numpy as jnp
from jax.experimental import pallas as pl
from jax.experimental.pallas import tpu as pltpu

LOG_MAX = 2.0
LOG_MIN = -20.0


def _round_up(n, m):
    return ((n + m - 1) // m) * m


def pack_params(params, *, weight_dtype=jnp.bfloat16):
    """Fuse the two heads and pack parameters into lane-dense aligned buffers.

    Returns (packed_w, packed_b, meta):
      packed_w : (rows, width) weight_dtype buffer holding [w1 | w2 | w_head]
                 stacked along rows; every segment starts on a sublane-pack
                 aligned row and is zero-padded to `width` (128-multiple) lanes.
      packed_b : (8, width) float32 buffer; rows 0/1/2 hold b1 / b2 / b_head.
      meta     : static shape/offset info for the kernel + wrapper.
    """
    w1, b1, w2, b2, wm, bm, ws, bs = params
    s_dim, hidden_dim = w1.shape
    a_dim = wm.shape[1]

    # Lane-dense width: multiple of 128 so stores are full-lane and the MXU
    # N dimension is filled (zero-padding propagates as exact zeros through
    # Linear + ReLU, so results are untouched).
    width = _round_up(max(hidden_dim, 2 * a_dim), 128)

    # Sublane packing granularity of the weight dtype (bf16: 16 rows / vreg).
    row_align = 16 if weight_dtype == jnp.bfloat16 else 8
    s_dim_pad = _round_up(s_dim, row_align)

    # Fused head: one matmul produces [mean | log_std].
    wh = jnp.concatenate([wm, ws], axis=1)          # (hidden, 2*a_dim)
    bh = jnp.concatenate([bm, bs], axis=1)          # (1, 2*a_dim)

    def seg(mat, pad_rows):
        return jnp.pad(mat.astype(jnp.float32),
                       ((0, pad_rows - mat.shape[0]), (0, width - mat.shape[1])))

    # w2 / w_head are padded to `width` rows so they match the lane-dense
    # activation width coming out of the previous matmul (extra rows are zero
    # and multiply exactly-zero activation columns).
    pieces, offsets, row = [], [], 0
    for mat, pad_rows in ((w1, s_dim_pad), (w2, width), (wh, width)):
        pieces.append(seg(mat, pad_rows))
        offsets.append(row)
        row += pad_rows
    packed_w = jnp.concatenate(pieces, axis=0).astype(weight_dtype)

    # Biases stay f32 (bias-add done in f32 in the kernel).
    packed_b = jnp.concatenate(
        [seg(b1, 1), seg(b2, 1), seg(bh, 1), jnp.zeros((5, width), jnp.float32)],
        axis=0)                                     # (8, width) f32

    meta = dict(s_dim=s_dim, s_dim_pad=s_dim_pad, hidden_dim=hidden_dim,
                a_dim=a_dim, width=width, w_offsets=tuple(offsets),
                w_rows=(s_dim_pad, width, width), weight_dtype=weight_dtype)
    return packed_w, packed_b, meta


def actor_kernel(x_ref, w_ref, b_ref, out_ref, *, a_dim, w_offs, w_rows):
    o1, o2, oh = w_offs
    r1, r2, rh = w_rows

    x = x_ref[...]                                  # (Bp, s_dim_pad) bf16

    # Static, pack-aligned views into the single weight buffer (no copies).
    w1 = w_ref[o1:o1 + r1, :]                       # (s_dim_pad, width) bf16
    w2 = w_ref[o2:o2 + r2, :]                       # (width, width) bf16
    wh = w_ref[oh:oh + rh, :]                       # (width, width) bf16
    b1 = b_ref[0:1, :]                              # (1, width) f32
    b2 = b_ref[1:2, :]
    bh = b_ref[2:3, :]

    # common_model: Linear -> ReLU -> Linear -> ReLU.
    # bf16 MXU matmuls with f32 accumulation; bias/ReLU/clamp in f32.
    h = jnp.maximum(jnp.dot(x, w1, preferred_element_type=jnp.float32) + b1, 0.0)
    h = jnp.maximum(
        jnp.dot(h.astype(w2.dtype), w2, preferred_element_type=jnp.float32) + b2,
        0.0)

    # Fused heads: columns [0, a_dim) = mean, [a_dim, 2*a_dim) = log_std.
    head = jnp.dot(h.astype(wh.dtype), wh, preferred_element_type=jnp.float32) + bh

    # Clamp only the log_std columns via mask-select (free VPU work; avoids
    # sub-128-lane column slicing and masked partial stores).
    col = jax.lax.broadcasted_iota(jnp.int32, head.shape, 1)
    is_logstd = (col >= a_dim) & (col < 2 * a_dim)
    out_ref[...] = jnp.where(is_logstd,
                             jnp.clip(head, LOG_MIN, LOG_MAX),
                             head)


def actor_forward(x, packed_w, packed_b, meta):
    """x: (batch, s_dim); packed buffers / meta from pack_params."""
    s_dim = meta["s_dim"]
    s_dim_pad = meta["s_dim_pad"]
    a_dim = meta["a_dim"]
    width = meta["width"]
    batch = x.shape[0]
    bp = _round_up(max(batch, 1), 16)               # bf16: 16 rows per vreg

    x_p = jnp.pad(x.astype(jnp.float32),
                  ((0, bp - batch), (0, s_dim_pad - s_dim)))
    x_p = x_p.astype(meta["weight_dtype"])

    kernel = functools.partial(actor_kernel, a_dim=a_dim,
                               w_offs=meta["w_offsets"], w_rows=meta["w_rows"])

    flops = 2 * bp * (s_dim_pad * width + width * width + width * width)
    bytes_accessed = (x_p.size * x_p.dtype.itemsize
                      + packed_w.size * packed_w.dtype.itemsize
                      + packed_b.size * packed_b.dtype.itemsize
                      + bp * width * 4)

    # Grid-less: everything is a VMEM-resident full block -> 3 input DMAs,
    # 1 (lane-dense, unmasked) output DMA, no pipeline bookkeeping.
    out = pl.pallas_call(
        kernel,
        out_shape=jax.ShapeDtypeStruct((bp, width), jnp.float32),
        in_specs=[pl.BlockSpec(memory_space=pltpu.MemorySpace.VMEM)] * 3,
        out_specs=pl.BlockSpec(memory_space=pltpu.MemorySpace.VMEM),
        cost_estimate=pl.CostEstimate(flops=flops, transcendentals=0,
                                      bytes_accessed=bytes_accessed),
    )(x_p, packed_w, packed_b)

    mean = out[:batch, :a_dim]
    log_std = out[:batch, a_dim:2 * a_dim]
    return mean, log_std


def make_params(key, s_dim, hidden_dim, a_dim):
    """Deterministic synthetic parameters (PyTorch-Linear shapes, transposed)."""
    ks = jax.random.split(key, 8)
    scale = 0.1
    w1 = scale * jax.random.normal(ks[0], (s_dim, hidden_dim), jnp.float32)
    b1 = scale * jax.random.normal(ks[1], (1, hidden_dim), jnp.float32)
    w2 = scale * jax.random.normal(ks[2], (hidden_dim, hidden_dim), jnp.float32)
    b2 = scale * jax.random.normal(ks[3], (1, hidden_dim), jnp.float32)
    wm = scale * jax.random.normal(ks[4], (hidden_dim, a_dim), jnp.float32)
    bm = scale * jax.random.normal(ks[5], (1, a_dim), jnp.float32)
    ws = scale * jax.random.normal(ks[6], (hidden_dim, a_dim), jnp.float32)
    bs = scale * jax.random.normal(ks[7], (1, a_dim), jnp.float32)
    return (w1, b1, w2, b2, wm, bm, ws, bs)


def reference_forward(x, params):
    w1, b1, w2, b2, wm, bm, ws, bs = params
    h = jnp.maximum(x @ w1 + b1, 0.0)
    h = jnp.maximum(h @ w2 + b2, 0.0)
    mean = h @ wm + bm
    log_std = jnp.clip(h @ ws + bs, LOG_MIN, LOG_MAX)
    return mean, log_std


if __name__ == "__main__":
    key = jax.random.PRNGKey(0)
    k_x, k_p = jax.random.split(key)

    batch, s_dim, hidden_dim, a_dim = 2, 16, 32, 8
    x = jax.random.normal(k_x, (batch, s_dim), jnp.float32)
    params = make_params(k_p, s_dim, hidden_dim, a_dim)

    # One-time parameter pack (done outside the hot path in real use).
    packed_w, packed_b, meta = pack_params(params)
    packed_w, packed_b = jax.block_until_ready((packed_w, packed_b))

    mean, log_std = actor_forward(x, packed_w, packed_b, meta)
    jax.block_until_ready((mean, log_std))

    mean_ref, log_std_ref = reference_forward(x, params)
    assert mean.shape == (batch, a_dim) and log_std.shape == (batch, a_dim)
    # bf16 MXU operands (f32 accumulation): tolerance relaxed per perf review.
    assert jnp.allclose(mean, mean_ref, atol=3e-2, rtol=3e-2), "mean mismatch"
    assert jnp.allclose(log_std, log_std_ref, atol=3e-2, rtol=3e-2), "log_std mismatch"

    print("KERNEL_OK")
</pallas_src>

<mosaic_0001>
module attributes {stable_mosaic.version = 11 : i64} {
  func.func @actor_kernel(%arg0: memref<16x16xbf16, #tpu.memory_space<vmem>>, %arg1: memref<272x128xbf16, #tpu.memory_space<vmem>>, %arg2: memref<8x128xf32, #tpu.memory_space<vmem>>, %arg3: memref<16x128xf32, #tpu.memory_space<vmem>>) attributes {dimension_semantics = [], scalar_prefetch = 0 : i64, scratch_operands = 0 : i64, tpu.core_type = #tpu.core_type<tc>} {
    %c0 = arith.constant 0 : index
    %c0_0 = arith.constant 0 : index
    %0 = vector.load %arg0[%c0, %c0_0] : memref<16x16xbf16, #tpu.memory_space<vmem>>, vector<16x16xbf16>
    %c0_1 = arith.constant 0 : index
    %c0_2 = arith.constant 0 : index
    %1 = vector.load %arg1[%c0_1, %c0_2] : memref<272x128xbf16, #tpu.memory_space<vmem>>, vector<16x128xbf16>
    %c16 = arith.constant 16 : index
    %c0_3 = arith.constant 0 : index
    %2 = vector.load %arg1[%c16, %c0_3] : memref<272x128xbf16, #tpu.memory_space<vmem>>, vector<128x128xbf16>
    %c144 = arith.constant 144 : index
    %c0_4 = arith.constant 0 : index
    %3 = vector.load %arg1[%c144, %c0_4] : memref<272x128xbf16, #tpu.memory_space<vmem>>, vector<128x128xbf16>
    %c0_5 = arith.constant 0 : index
    %c0_6 = arith.constant 0 : index
    %4 = vector.load %arg2[%c0_5, %c0_6] : memref<8x128xf32, #tpu.memory_space<vmem>>, vector<1x128xf32>
    %c1 = arith.constant 1 : index
    %c0_7 = arith.constant 0 : index
    %5 = vector.load %arg2[%c1, %c0_7] : memref<8x128xf32, #tpu.memory_space<vmem>>, vector<1x128xf32>
    %c2 = arith.constant 2 : index
    %c0_8 = arith.constant 0 : index
    %6 = vector.load %arg2[%c2, %c0_8] : memref<8x128xf32, #tpu.memory_space<vmem>>, vector<1x128xf32>
    %cst = arith.constant dense<0.000000e+00> : vector<16x128xf32>
    %7 = tpu.matmul %0, %1, %cst {dimension_numbers = #tpu.dot_dimension_numbers<[1], [0], [0], [1], [0, 0, 1, 1], [], []>} : vector<16x16xbf16>, vector<16x128xbf16>, vector<16x128xf32> -> vector<16x128xf32>
    %8 = vector.broadcast %4 : vector<1x128xf32> to vector<16x128xf32>
    %9 = arith.addf %7, %8 : vector<16x128xf32>
    %cst_9 = arith.constant 0.000000e+00 : f32
    %10 = vector.broadcast %cst_9 : f32 to vector<16x128xf32>
    %11 = arith.maximumf %9, %10 : vector<16x128xf32>
    %12 = arith.truncf %11 : vector<16x128xf32> to vector<16x128xbf16>
    %cst_10 = arith.constant dense<0.000000e+00> : vector<16x128xf32>
    %13 = tpu.matmul %12, %2, %cst_10 {dimension_numbers = #tpu.dot_dimension_numbers<[1], [0], [0], [1], [0, 0, 1, 1], [], []>} : vector<16x128xbf16>, vector<128x128xbf16>, vector<16x128xf32> -> vector<16x128xf32>
    %14 = vector.broadcast %5 : vector<1x128xf32> to vector<16x128xf32>
    %15 = arith.addf %13, %14 : vector<16x128xf32>
    %cst_11 = arith.constant 0.000000e+00 : f32
    %16 = vector.broadcast %cst_11 : f32 to vector<16x128xf32>
    %17 = arith.maximumf %15, %16 : vector<16x128xf32>
    %18 = arith.truncf %17 : vector<16x128xf32> to vector<16x128xbf16>
    %cst_12 = arith.constant dense<0.000000e+00> : vector<16x128xf32>
    %19 = tpu.matmul %18, %3, %cst_12 {dimension_numbers = #tpu.dot_dimension_numbers<[1], [0], [0], [1], [0, 0, 1, 1], [], []>} : vector<16x128xbf16>, vector<128x128xbf16>, vector<16x128xf32> -> vector<16x128xf32>
    %20 = vector.broadcast %6 : vector<1x128xf32> to vector<16x128xf32>
    %21 = arith.addf %19, %20 : vector<16x128xf32>
    %22 = tpu.iota {dimensions = array<i32: 1>} : vector<16x128xi32>
    %c8_i32 = arith.constant 8 : i32
    %23 = vector.broadcast %c8_i32 : i32 to vector<16x128xi32>
    %24 = arith.cmpi sge, %22, %23 : vector<16x128xi32>
    %c16_i32 = arith.constant 16 : i32
    %25 = vector.broadcast %c16_i32 : i32 to vector<16x128xi32>
    %26 = arith.cmpi slt, %22, %25 : vector<16x128xi32>
    %27 = arith.andi %24, %26 : vector<16x128xi1>
    %cst_13 = arith.constant -2.000000e+01 : f32
    %cst_14 = arith.constant 2.000000e+00 : f32
    %28 = vector.broadcast %cst_13 : f32 to vector<16x128xf32>
    %29 = arith.maximumf %28, %21 : vector<16x128xf32>
    %30 = vector.broadcast %cst_14 : f32 to vector<16x128xf32>
    %31 = arith.minimumf %30, %29 : vector<16x128xf32>
    %32 = arith.select %27, %31, %21 : vector<16x128xi1>, vector<16x128xf32>
    %c0_15 = arith.constant 0 : index
    %c0_16 = arith.constant 0 : index
    %33 = vector.load %arg3[%c0_15, %c0_16] : memref<16x128xf32, #tpu.memory_space<vmem>>, vector<16x128xf32>
    tpu.vector_store %arg3[%c0_15, %c0_16], %32 {strides = array<i32>} : memref<16x128xf32, #tpu.memory_space<vmem>>, vector<16x128xf32>,
    return
  }
}

</mosaic_0001>

<llo_original>
// kernel: tpu_custom_call.1
$region0: #{tpu_custom_call.1}
  #allocation0 [shape = 'u32[]', space=smem, size = 0x4, offset = 0x4, fixed_abs, tag = 'smem constant byte address 0x4 - core index']
  #allocation1 [shape = 'u32[144,128]{1,0:T(1,128)}', space=vmem, size = 0x12000, scoped, tag = 'internal scratch']
  %s0 = inlined_call_operand.hbm [shape: bf16[16,16], index: 0, kind: input, shape index: {}]
  %s1 = inlined_call_operand.hbm [shape: bf16[272,128], index: 1, kind: input, shape index: {}]
  %s2 = inlined_call_operand.hbm [shape: f32[8,128], index: 2, kind: input, shape index: {}]
  %s3 = inlined_call_operand.hbm [shape: f32[16,128], index: 3, kind: output, shape index: {}]
  %s4 = sld [smem:[#allocation0]]
  $region34: #{tpu_custom_call.1} parent=0
    _
  %s6 = ssub.s32 1, %s4
  %s7 = scalar_select 0, %s6, %s4
  $region1: #{tpu_custom_call.1} parent=0
    #allocation2 [shape = 'u8[4096]{0}', space=vmem, size = 0x1000, scoped, tag = 'input window, operand 0, single buffered']
    #allocation3 [shape = 's32[1]{0}', space=sflag, size = 0x4, scoped, tag = 'scoped memory for tpu_custom_call.1']
    #allocation4 [shape = 's32[1]{0}', space=sflag, size = 0x4, scoped, tag = 'scoped memory for tpu_custom_call.1']
    #allocation5 [shape = 'u8[69632]{0}', space=vmem, size = 0x11000, scoped, tag = 'input window, operand 1, single buffered']
    #allocation6 [shape = 's32[1]{0}', space=sflag, size = 0x4, scoped, tag = 'scoped memory for tpu_custom_call.1']
    #allocation7 [shape = 'u8[4096]{0}', space=vmem, size = 0x1000, scoped, tag = 'input window, operand 2, single buffered']
    #allocation8 [shape = 'u8[8192]{0}', space=vmem, size = 0x2000, scoped, tag = 'output window, operand 0, single buffered']
    %8 = vsyncpa [#allocation3], 0
    %9 = vsyncpa [#allocation6], 0
    %10 = vsyncpa [#allocation4], 0
    // Predicated region
    $region2: #{tpu_custom_call.1} parent=1 // pred_check
      _
    $region3: #{tpu_custom_call.1} parent=1 // pred_check_branch
      %12 = sbr.rel (0) target = $region5
    $region4: #{tpu_custom_call.1} parent=1 // pred_region
      %s14 = ssub.s32 128, 128
      %15 = vsyncadd [#allocation3], %s14
      %s16 = sshll.u32 [#allocation2], 4
      %s17 = int_to_ptr.vmem [resolvable:$true] %s16
      %22 = dma.hbm_to_vmem [thread:$0]  %s0, 128, %s17, [#allocation3], 64, 64, 4
    $region5: #{tpu_custom_call.1} parent=1 // pred_fallthru
      _
    // Predicated region
    $region6: #{tpu_custom_call.1} parent=1 // pred_check
      _
    $region7: #{tpu_custom_call.1} parent=1 // pred_check_branch
      %24 = sbr.rel (0) target = $region9
    $region8: #{tpu_custom_call.1} parent=1 // pred_region
      %s26 = ssub.s32 2176, 2176
      %27 = vsyncadd [#allocation6], %s26
      %s28 = sshll.u32 [#allocation5], 4
      %s29 = int_to_ptr.vmem [resolvable:$true] %s28
      %34 = dma.hbm_to_vmem [thread:$0]  %s1, 2176, %s29, [#allocation6], 64, 64, 4
    $region9: #{tpu_custom_call.1} parent=1 // pred_fallthru
      _
    // Predicated region
    $region10: #{tpu_custom_call.1} parent=1 // pred_check
      _
    $region11: #{tpu_custom_call.1} parent=1 // pred_check_branch
      %36 = sbr.rel (0) target = $region13
    $region12: #{tpu_custom_call.1} parent=1 // pred_region
      %s38 = ssub.s32 128, 128
      %39 = vsyncadd [#allocation6], %s38
      %s41 = sshll.u32 [#allocation7], 4
      %s42 = int_to_ptr.vmem [resolvable:$true] %s41
      %44 = dma.hbm_to_vmem [thread:$0]  %s2, 128, %s42, [#allocation6]
    $region13: #{tpu_custom_call.1} parent=1 // pred_fallthru
      _
    // Predicated region
    $region14: #{tpu_custom_call.1} parent=1 // pred_check
      _
    $region15: #{tpu_custom_call.1} parent=1 // pred_check_branch
      %46 = sbr.rel (0) target = $region17
    $region16: #{tpu_custom_call.1} parent=1 // pred_region
      %47 = dma.done [#allocation3], 128
    $region17: #{tpu_custom_call.1} parent=1 // pred_fallthru
      _
    // Predicated region
    $region18: #{tpu_custom_call.1} parent=1 // pred_check
      _
    $region19: #{tpu_custom_call.1} parent=1 // pred_check_branch
      %49 = sbr.rel (0) target = $region21
    $region20: #{tpu_custom_call.1} parent=1 // pred_region
      %50 = dma.done [#allocation6], 2176
    $region21: #{tpu_custom_call.1} parent=1 // pred_fallthru
      _
    // Predicated region
    $region22: #{tpu_custom_call.1} parent=1 // pred_check
      _
    $region23: #{tpu_custom_call.1} parent=1 // pred_check_branch
      %52 = sbr.rel (0) target = $region25
    $region24: #{tpu_custom_call.1} parent=1 // pred_region
      %53 = dma.done [#allocation6], 128
    $region25: #{tpu_custom_call.1} parent=1 // pred_fallthru
      _
    %v55 = vld [vmem:[#allocation2] sm:$0xf]
    %v56 = vld [vmem:[#allocation2 + $0x4] sm:$0xf]
    %v57 = vld [vmem:[#allocation5] sm:$0xf]
    %v58 = vld [vmem:[#allocation5 + $0x4] sm:$0xf]
    %v59 = vld [vmem:[#allocation5 + $0x8] sm:$0xf]
    %v60 = vld [vmem:[#allocation5 + $0xc] sm:$0xf]
    %v61 = vld [vmem:[#allocation5 + $0x10] sm:$0xf]
    %v62 = vld [vmem:[#allocation5 + $0x14] sm:$0xf]
    %v63 = vld [vmem:[#allocation5 + $0x18] sm:$0xf]
    %v64 = vld [vmem:[#allocation5 + $0x1c] sm:$0xf]
    %v65 = vld [vmem:[#allocation5 + $0x20] sm:$0xf]
    %v66 = vld [vmem:[#allocation5 + $0x24] sm:$0xf]
    %v67 = vld [vmem:[#allocation5 + $0x28] sm:$0xf]
    %v68 = vld [vmem:[#allocation5 + $0x2c] sm:$0xf]
    %v69 = vld [vmem:[#allocation5 + $0x30] sm:$0xf]
    %v70 = vld [vmem:[#allocation5 + $0x34] sm:$0xf]
    %v71 = vld [vmem:[#allocation5 + $0x38] sm:$0xf]
    %v72 = vld [vmem:[#allocation5 + $0x3c] sm:$0xf]
    %v73 = vld [vmem:[#allocation5 + $0x40] sm:$0xf]
    %v74 = vld [vmem:[#allocation5 + $0x44] sm:$0xf]
    %v75 = vld [vmem:[#allocation5 + $0x48] sm:$0xf]
    %v76 = vld [vmem:[#allocation5 + $0x4c] sm:$0xf]
    %v77 = vld [vmem:[#allocation5 + $0x50] sm:$0xf]
    %v78 = vld [vmem:[#allocation5 + $0x54] sm:$0xf]
    %v79 = vld [vmem:[#allocation5 + $0x58] sm:$0xf]
    %v80 = vld [vmem:[#allocation5 + $0x5c] sm:$0xf]
    %v81 = vld [vmem:[#allocation5 + $0x60] sm:$0xf]
    %v82 = vld [vmem:[#allocation5 + $0x64] sm:$0xf]
    %v83 = vld [vmem:[#allocation5 + $0x68] sm:$0xf]
    %v84 = vld [vmem:[#allocation5 + $0x6c] sm:$0xf]
    %v85 = vld [vmem:[#allocation5 + $0x70] sm:$0xf]
    %v86 = vld [vmem:[#allocation5 + $0x74] sm:$0xf]
    %v87 = vld [vmem:[#allocation5 + $0x78] sm:$0xf]
    %v88 = vld [vmem:[#allocation5 + $0x7c] sm:$0xf]
    %v89 = vld [vmem:[#allocation5 + $0x80] sm:$0xf]
    %v90 = vld [vmem:[#allocation5 + $0x84] sm:$0xf]
    %v91 = vld [vmem:[#allocation7] sm:$0x1]
    %v92 = vld [vmem:[#allocation7 + $0x1] sm:$0x1]
    %v93 = vld [vmem:[#allocation7 + $0x2] sm:$0x1]
    %v94 = vlaneseq
    %v95 = vshrl.u32 %v94, 7
    %v96 = vsub.s32 0, %v95
    %v97 = vrot.slane %v91, %v96
    %v100 = vunpack.c.l.b16 %v55
    %v101 = vunpack.c.l.b16 %v56
    %v102 = vpack.c.b16 %v101, %v100
    %v105 = vunpack.c.l.b16 %v57
    %v106 = vunpack.c.l.b16 %v58
    %v107 = vpack.c.b16 %v106, %v105
    %vm109 = vcmask 130048
    %v111 = vsel %vm109, %v102, 0
    %113 = vmatprep.subr.bf16.mxu0 0
    %114 = vmatpush1.bf16.msra.mxu0 0
    %115 = vmatprep.subr.bf16.mxu0 0
    %116 = vmatpush1.bf16.msra.mxu0 0
    %117 = vmatprep.subr.bf16.mxu0 0
    %118 = vmatpush1.bf16.msra.mxu0 0
    %119 = vmatprep.subr.bf16.mxu0 0
    %120 = vmatpush1.bf16.msra.mxu0 0
    %121 = vmatprep.subr.bf16.mxu0 0
    %122 = vmatpush1.bf16.msra.mxu0 0
    %123 = vmatprep.subr.bf16.mxu0 0
    %124 = vmatpush1.bf16.msra.mxu0 0
    %125 = vmatprep.subr.bf16.mxu0 0
    %126 = vmatpush1.bf16.msra.mxu0 0
    %127 = vmatprep.subr.bf16.mxu0 0
    %128 = vmatpush1.bf16.msra.mxu0 %v107
    %129 = vmatprep.subr.bf16.mxu0 0
    %130 = vmatpush2.bf16.msra.mxu0 0
    %131 = vmatprep.subr.bf16.mxu0 0
    %132 = vmatpush2.bf16.msra.mxu0 0
    %133 = vmatprep.subr.bf16.mxu0 0
    %134 = vmatpush2.bf16.msra.mxu0 0
    %135 = vmatprep.subr.bf16.mxu0 0
    %136 = vmatpush2.bf16.msra.mxu0 0
    %137 = vmatprep.subr.bf16.mxu0 0
    %138 = vmatpush2.bf16.msra.mxu0 0
    %139 = vmatprep.subr.bf16.mxu0 0
    %140 = vmatpush2.bf16.msra.mxu0 0
    %141 = vmatprep.subr.bf16.mxu0 0
    %142 = vmatpush2.bf16.msra.mxu0 0
    %143 = vmatprep.subr.bf16.mxu0 0
    %144 = vmatpush2.bf16.msra.mxu0 0
    %145 = vmatprep.mubr.bf16.mxu0 0
    %146 = vmatmul.mubr.bf16.gmra.mxu0 %v111
    %v147 = vpop.f32.mrf.mxu0
    %v148 = vadd.f32 %v97, %v147
    %v149 = vpop.f32.mrf.mxu0
    %v150 = vpop.f32.mrf.mxu0
    %v151 = vadd.f32 %v97, %v150
    %v152 = vpop.f32.mrf.mxu0
    %153 = vdwg.mxu0
    %v154 = vmax.f32 %v148, 0.0
    %v155 = vmax.f32 %v151, 0.0
    %v156 = vpack.c.bf16 %v155, %v154
    %v157 = vlaneseq
    %v158 = vshrl.u32 %v157, 7
    %v159 = vsub.s32 0, %v158
    %v160 = vrot.slane %v92, %v159
    %v177 = vunpack.c.l.b16 %v59
    %v178 = vunpack.c.l.b16 %v60
    %v179 = vunpack.c.l.b16 %v61
    %v180 = vunpack.c.l.b16 %v62
    %v181 = vunpack.c.l.b16 %v63
    %v182 = vunpack.c.l.b16 %v64
    %v183 = vunpack.c.l.b16 %v65
    %v184 = vunpack.c.l.b16 %v66
    %v185 = vunpack.c.l.b16 %v67
    %v186 = vunpack.c.l.b16 %v68
    %v187 = vunpack.c.l.b16 %v69
    %v188 = vunpack.c.l.b16 %v70
    %v189 = vunpack.c.l.b16 %v71
    %v190 = vunpack.c.l.b16 %v72
    %v191 = vunpack.c.l.b16 %v73
    %v192 = vunpack.c.l.b16 %v74
    %v193 = vpack.c.b16 %v178, %v177
    %v194 = vpack.c.b16 %v180, %v179
    %v195 = vpack.c.b16 %v182, %v181
    %v196 = vpack.c.b16 %v184, %v183
    %v197 = vpack.c.b16 %v186, %v185
    %v198 = vpack.c.b16 %v188, %v187
    %v199 = vpack.c.b16 %v190, %v189
    %v200 = vpack.c.b16 %v192, %v191
    %209 = vmatprep.subr.bf16.mxu0 0
    %210 = vmatpush1.bf16.msra.mxu0 %v200
    %211 = vmatprep.subr.bf16.mxu0 0
    %212 = vmatpush1.bf16.msra.mxu0 %v199
    %213 = vmatprep.subr.bf16.mxu0 0
    %214 = vmatpush1.bf16.msra.mxu0 %v198
    %215 = vmatprep.subr.bf16.mxu0 0
    %216 = vmatpush1.bf16.msra.mxu0 %v197
    %217 = vmatprep.subr.bf16.mxu0 0
    %218 = vmatpush1.bf16.msra.mxu0 %v196
    %219 = vmatprep.subr.bf16.mxu0 0
    %220 = vmatpush1.bf16.msra.mxu0 %v195
    %221 = vmatprep.subr.bf16.mxu0 0
    %222 = vmatpush1.bf16.msra.mxu0 %v194
    %223 = vmatprep.subr.bf16.mxu0 0
    %224 = vmatpush1.bf16.msra.mxu0 %v193
    %225 = vmatprep.subr.bf16.mxu0 0
    %226 = vmatpush2.bf16.msra.mxu0 0
    %227 = vmatprep.subr.bf16.mxu0 0
    %228 = vmatpush2.bf16.msra.mxu0 0
    %229 = vmatprep.subr.bf16.mxu0 0
    %230 = vmatpush2.bf16.msra.mxu0 0
    %231 = vmatprep.subr.bf16.mxu0 0
    %232 = vmatpush2.bf16.msra.mxu0 0
    %233 = vmatprep.subr.bf16.mxu0 0
    %234 = vmatpush2.bf16.msra.mxu0 0
    %235 = vmatprep.subr.bf16.mxu0 0
    %236 = vmatpush2.bf16.msra.mxu0 0
    %237 = vmatprep.subr.bf16.mxu0 0
    %238 = vmatpush2.bf16.msra.mxu0 0
    %239 = vmatprep.subr.bf16.mxu0 0
    %240 = vmatpush2.bf16.msra.mxu0 0
    %241 = vmatprep.mubr.bf16.mxu0 0
    %242 = vmatmul.mubr.bf16.gmra.mxu0 %v156
    %v243 = vpop.f32.mrf.mxu0
    %v244 = vadd.f32 %v160, %v243
    %v245 = vpop.f32.mrf.mxu0
    %v246 = vpop.f32.mrf.mxu0
    %v247 = vadd.f32 %v160, %v246
    %v248 = vpop.f32.mrf.mxu0
    %249 = vdwg.mxu0
    %v250 = vmax.f32 %v244, 0.0
    %v251 = vmax.f32 %v247, 0.0
    %v252 = vpack.c.bf16 %v251, %v250
    %v253 = vlaneseq
    %v254 = vshrl.u32 %v253, 7
    %v255 = vsub.s32 0, %v254
    %v256 = vrot.slane %v93, %v255
    %v273 = vunpack.c.l.b16 %v75
    %v274 = vunpack.c.l.b16 %v76
    %v275 = vunpack.c.l.b16 %v77
    %v276 = vunpack.c.l.b16 %v78
    %v277 = vunpack.c.l.b16 %v79
    %v278 = vunpack.c.l.b16 %v80
    %v279 = vunpack.c.l.b16 %v81
    %v280 = vunpack.c.l.b16 %v82
    %v281 = vunpack.c.l.b16 %v83
    %v282 = vunpack.c.l.b16 %v84
    %v283 = vunpack.c.l.b16 %v85
    %v284 = vunpack.c.l.b16 %v86
    %v285 = vunpack.c.l.b16 %v87
    %v286 = vunpack.c.l.b16 %v88
    %v287 = vunpack.c.l.b16 %v89
    %v288 = vunpack.c.l.b16 %v90
    %v289 = vpack.c.b16 %v274, %v273
    %v290 = vpack.c.b16 %v276, %v275
    %v291 = vpack.c.b16 %v278, %v277
    %v292 = vpack.c.b16 %v280, %v279
    %v293 = vpack.c.b16 %v282, %v281
    %v294 = vpack.c.b16 %v284, %v283
    %v295 = vpack.c.b16 %v286, %v285
    %v296 = vpack.c.b16 %v288, %v287
    %305 = vmatprep.subr.bf16.mxu0 0
    %306 = vmatpush1.bf16.msra.mxu0 %v296
    %307 = vmatprep.subr.bf16.mxu0 0
    %308 = vmatpush1.bf16.msra.mxu0 %v295
    %309 = vmatprep.subr.bf16.mxu0 0
    %310 = vmatpush1.bf16.msra.mxu0 %v294
    %311 = vmatprep.subr.bf16.mxu0 0
    %312 = vmatpush1.bf16.msra.mxu0 %v293
    %313 = vmatprep.subr.bf16.mxu0 0
    %314 = vmatpush1.bf16.msra.mxu0 %v292
    %315 = vmatprep.subr.bf16.mxu0 0
    %316 = vmatpush1.bf16.msra.mxu0 %v291
    %317 = vmatprep.subr.bf16.mxu0 0
    %318 = vmatpush1.bf16.msra.mxu0 %v290
    %319 = vmatprep.subr.bf16.mxu0 0
    %320 = vmatpush1.bf16.msra.mxu0 %v289
    %321 = vmatprep.subr.bf16.mxu0 0
    %322 = vmatpush2.bf16.msra.mxu0 0
    %323 = vmatprep.subr.bf16.mxu0 0
    %324 = vmatpush2.bf16.msra.mxu0 0
    %325 = vmatprep.subr.bf16.mxu0 0
    %326 = vmatpush2.bf16.msra.mxu0 0
    %327 = vmatprep.subr.bf16.mxu0 0
    %328 = vmatpush2.bf16.msra.mxu0 0
    %329 = vmatprep.subr.bf16.mxu0 0
    %330 = vmatpush2.bf16.msra.mxu0 0
    %331 = vmatprep.subr.bf16.mxu0 0
    %332 = vmatpush2.bf16.msra.mxu0 0
    %333 = vmatprep.subr.bf16.mxu0 0
    %334 = vmatpush2.bf16.msra.mxu0 0
    %335 = vmatprep.subr.bf16.mxu0 0
    %336 = vmatpush2.bf16.msra.mxu0 0
    %337 = vmatprep.mubr.bf16.mxu0 0
    %338 = vmatmul.mubr.bf16.gmra.mxu0 %v252
    %v339 = vpop.f32.mrf.mxu0
    %v340 = vadd.f32 %v256, %v339
    %v341 = vpop.f32.mrf.mxu0
    %v342 = vpop.f32.mrf.mxu0
    %v343 = vadd.f32 %v256, %v342
    %v344 = vpop.f32.mrf.mxu0
    %345 = vdwg.mxu0
    %v346 = vlaneseq
    %v347 = vand.u32 %v346, 127
    %vm348 = vcmp.ge.s32.totalorder %v347, 8
    %vm349 = vcmp.lt.s32.totalorder %v347, 16
    %vm350 = vmand %vm348, %vm349
    %v351 = vmax.f32 %v340, -20.0
    %v352 = vmax.f32 %v343, -20.0
    %v353 = vmin.f32 %v351, 2.0
    %v354 = vmin.f32 %v352, 2.0
    %v355 = vsel %vm350, %v353, %v340
    %v356 = vsel %vm350, %v354, %v343
    %357 = vst [vmem:[#allocation8] sm:$0xff] %v355
    %358 = vst [vmem:[#allocation8 + $0x8] sm:$0xff] %v356
    // Predicated region
    $region26: #{tpu_custom_call.1} parent=1 // pred_check
      _
    $region27: #{tpu_custom_call.1} parent=1 // pred_check_branch
      %360 = sbr.rel (0) target = $region29
    $region28: #{tpu_custom_call.1} parent=1 // pred_region
      %s362 = ssub.s32 256, 256
      %363 = vsyncadd [#allocation4], %s362
      %s364 = sshll.u32 [#allocation8], 4
      %s365 = int_to_ptr.vmem [resolvable:$true] %s364
      %370 = dma.vmem_to_hbm [thread:$0]  %s365, 256, %s3, [#allocation4], 128, 128, 8
    $region29: #{tpu_custom_call.1} parent=1 // pred_fallthru
      _
    // Predicated region
    $region30: #{tpu_custom_call.1} parent=1 // pred_check
      _
    $region31: #{tpu_custom_call.1} parent=1 // pred_check_branch
      %372 = sbr.rel (0) target = $region33
    $region32: #{tpu_custom_call.1} parent=1 // pred_region
      %373 = dma.done [#allocation4], 256
    $region33: #{tpu_custom_call.1} parent=1 // pred_fallthru
      _
    %374 = vsyncpa [#allocation3], 1
    %375 = vsyncpa [#allocation6], 1
    %376 = vsyncpa [#allocation4], 1

</llo_original>
